<compile_context>
chip_gen: v5e
topology: v5e:2x2
jax: 0.10.0
libtpu: 0.0.40
codegen_flags: <defaults>
</compile_context>

<pallas_src>
import functools
import math

import jax
import jax.numpy as jnp
from jax.experimental import pallas as pl
from jax.experimental.pallas import tpu as pltpu

NEG_INF = -1e9
LANE = 128
ROW = 16                      # row (sublane) granularity, safe for f32 & bf16


def _round_up(x, m):
    return ((x + m - 1) // m) * m


def _vmem_limit_bytes():
    try:
        cap = int(pltpu.get_tpu_info().vmem_capacity_bytes)
    except Exception:
        cap = 64 * 1024 * 1024          # conservative (v7x per-TC VMEM)
    return max(16 * 1024 * 1024, min(int(cap * 0.6), 100 * 1024 * 1024))


VMEM_LIMIT = _vmem_limit_bytes()


def _pad2(a, rows, cols):
    pr, pc = rows - a.shape[0], cols - a.shape[1]
    if pr == 0 and pc == 0:
        return a
    return jnp.pad(a, ((0, pr), (0, pc)))


def _pad_seq(a, new_t):
    # pad axis 1 of a (B, T, D) array
    if new_t == a.shape[1]:
        return a
    return jnp.pad(a, ((0, 0), (0, new_t - a.shape[1]), (0, 0)))


# --------------------------- fused linear kernels ----------------------------
# y = act( LN(x) @ W + b ) + residual      (LN / act / residual all optional)
#
# Path A (K fits one tile): grid=(M/tm, N/tn); LN'd row-tile cached in bf16
#   VMEM scratch at j==0 and reused for every N tile; no accumulator.
# Path B (K tiled):         grid=(M/tm, N/tn, K/tk); f32 VMEM accumulator with
#   pl.when init/finalize; no LN on this path.

def _linear_k1_kernel(x_ref, w_ref, b_ref, *rest, activation, has_res,
                      has_ln, eps, inv_k):
    idx = 0
    if has_ln:
        g_ref, be_ref = rest[0], rest[1]
        idx = 2
    if has_res:
        r_ref = rest[idx]
        idx += 1
    o_ref = rest[idx]

    if has_ln:
        xs_ref = rest[idx + 1]            # (tm, Kp) bf16 scratch

        @pl.when(pl.program_id(1) == 0)   # compute LN once per row tile
        def _():
            x = x_ref[...].astype(jnp.float32)
            # padded feature columns are zero -> sums are exact; divide by the
            # true feature count, not the padded one.
            mu = jnp.sum(x, axis=-1, keepdims=True) * inv_k
            ex2 = jnp.sum(x * x, axis=-1, keepdims=True) * inv_k
            var = ex2 - mu * mu
            xn = (x - mu) * jax.lax.rsqrt(var + eps)
            xs_ref[...] = (xn * g_ref[...] + be_ref[...]).astype(jnp.bfloat16)

        xb = xs_ref[...]
    else:
        xb = x_ref[...].astype(jnp.bfloat16)   # no-op if already bf16

    y = jnp.dot(xb, w_ref[...], preferred_element_type=jnp.float32) + b_ref[...]
    if activation == "relu":
        y = jnp.maximum(y, 0.0)
    if has_res:
        y = y + r_ref[...].astype(jnp.float32)
    o_ref[...] = y.astype(o_ref.dtype)


def _linear_acc_kernel(x_ref, w_ref, b_ref, *rest, activation, has_res):
    idx = 0
    if has_res:
        r_ref = rest[0]
        idx = 1
    o_ref = rest[idx]
    acc_ref = rest[idx + 1]

    k = pl.program_id(2)
    nk = pl.num_programs(2)

    @pl.when(k == 0)
    def _():
        acc_ref[...] = jnp.zeros_like(acc_ref)

    acc_ref[...] += jnp.dot(x_ref[...].astype(jnp.bfloat16), w_ref[...],
                            preferred_element_type=jnp.float32)

    @pl.when(k == nk - 1)
    def _():
        y = acc_ref[...] + b_ref[...]
        if activation == "relu":
            y = jnp.maximum(y, 0.0)
        if has_res:
            y = y + r_ref[...].astype(jnp.float32)
        o_ref[...] = y.astype(o_ref.dtype)


def pallas_linear(x, w, b, *, activation=None, residual=None, ln=None,
                  eps=1e-5, out_dtype=jnp.bfloat16,
                  tm_max=256, tn_max=512, tk_max=512):
    """y = act(LN(x) @ w + b) + residual.  x:(M,K), w:(K,N).  Returns (M,N)."""
    M, K = x.shape
    Kw, N = w.shape
    assert K == Kw
    has_ln = ln is not None
    has_res = residual is not None

    # lane-dense N / K padding (multiples of 128)
    Np = _round_up(N, LANE)
    tn = LANE * math.gcd(Np // LANE, tn_max // LANE)
    Kp = _round_up(K, LANE)
    if has_ln or Kp <= tk_max:
        tk = Kp                                 # single K tile
    else:
        tk = LANE * math.gcd(Kp // LANE, tk_max // LANE)

    tm = min(tm_max, _round_up(M, ROW))
    Mp = _round_up(M, tm)
    # try to expose >=2 parallel blocks (v7x has 2 TensorCores)
    if Mp // tm < 2 and Np // tn < 2 and Mp >= 2 * ROW:
        tm = _round_up(Mp // 2, ROW)
        Mp = _round_up(M, tm)

    xp = _pad2(x, Mp, Kp)
    wp = _pad2(w.astype(jnp.bfloat16), Kp, Np)
    bp = _pad2(b.reshape(1, N).astype(jnp.float32), 1, Np)

    nk = Kp // tk
    if nk == 1:
        in_specs = [
            pl.BlockSpec((tm, Kp), lambda i, j: (i, 0)),
            pl.BlockSpec((Kp, tn), lambda i, j: (0, j)),
            pl.BlockSpec((1, tn), lambda i, j: (0, j)),
        ]
        args = [xp, wp, bp]
        scratch = []
        if has_ln:
            g, be = ln
            in_specs.append(pl.BlockSpec((1, Kp), lambda i, j: (0, 0)))
            in_specs.append(pl.BlockSpec((1, Kp), lambda i, j: (0, 0)))
            args.append(_pad2(g.reshape(1, K).astype(jnp.float32), 1, Kp))
            args.append(_pad2(be.reshape(1, K).astype(jnp.float32), 1, Kp))
            scratch.append(pltpu.VMEM((tm, Kp), jnp.bfloat16))
        if has_res:
            in_specs.append(pl.BlockSpec((tm, tn), lambda i, j: (i, j)))
            args.append(_pad2(residual, Mp, Np))

        kernel = functools.partial(_linear_k1_kernel, activation=activation,
                                   has_res=has_res, has_ln=has_ln, eps=eps,
                                   inv_k=1.0 / K)
        # LN scratch is reused across j -> keep the N axis sequential when LN
        # is fused so every core sees j==0 first.
        dims = ("parallel", "arbitrary") if has_ln else ("parallel", "parallel")
        out = pl.pallas_call(
            kernel,
            out_shape=jax.ShapeDtypeStruct((Mp, Np), out_dtype),
            grid=(Mp // tm, Np // tn),
            in_specs=in_specs,
            out_specs=pl.BlockSpec((tm, tn), lambda i, j: (i, j)),
            scratch_shapes=scratch,
            compiler_params=pltpu.CompilerParams(
                dimension_semantics=dims, vmem_limit_bytes=VMEM_LIMIT),
        )(*args)
    else:
        in_specs = [
            pl.BlockSpec((tm, tk), lambda i, j, kk: (i, kk)),
            pl.BlockSpec((tk, tn), lambda i, j, kk: (kk, j)),
            pl.BlockSpec((1, tn), lambda i, j, kk: (0, j)),
        ]
        args = [xp, wp, bp]
        if has_res:
            in_specs.append(pl.BlockSpec((tm, tn), lambda i, j, kk: (i, j)))
            args.append(_pad2(residual, Mp, Np))
        kernel = functools.partial(_linear_acc_kernel, activation=activation,
                                   has_res=has_res)
        out = pl.pallas_call(
            kernel,
            out_shape=jax.ShapeDtypeStruct((Mp, Np), out_dtype),
            grid=(Mp // tm, Np // tn, nk),
            in_specs=in_specs,
            out_specs=pl.BlockSpec((tm, tn), lambda i, j, kk: (i, j)),
            scratch_shapes=[pltpu.VMEM((tm, tn), jnp.float32)],
            compiler_params=pltpu.CompilerParams(
                dimension_semantics=("parallel", "parallel", "arbitrary"),
                vmem_limit_bytes=VMEM_LIMIT),
        )(*args)

    return out[:M, :N]


# --------------------------- standalone layernorm ----------------------------
# only used for the final LN of each encoder/decoder stack.

def _layernorm_kernel(x_ref, g_ref, b_ref, o_ref, *, eps):
    x = x_ref[...].astype(jnp.float32)
    mu = jnp.mean(x, axis=-1, keepdims=True)
    var = jnp.mean(jnp.square(x - mu), axis=-1, keepdims=True)
    y = (x - mu) * jax.lax.rsqrt(var + eps)
    o_ref[...] = (y * g_ref[...] + b_ref[...]).astype(o_ref.dtype)


def pallas_layernorm(x, gamma, beta, eps=1e-5, tm_max=256):
    M, D = x.shape
    tm = min(tm_max, _round_up(M, ROW))
    Mp = _round_up(M, tm)
    xp = _pad2(x, Mp, D)
    out = pl.pallas_call(
        functools.partial(_layernorm_kernel, eps=eps),
        out_shape=jax.ShapeDtypeStruct((Mp, D), jnp.bfloat16),
        grid=(Mp // tm,),
        in_specs=[pl.BlockSpec((tm, D), lambda i: (i, 0)),
                  pl.BlockSpec((1, D), lambda i: (0, 0)),
                  pl.BlockSpec((1, D), lambda i: (0, 0))],
        out_specs=pl.BlockSpec((tm, D), lambda i: (i, 0)),
        compiler_params=pltpu.CompilerParams(
            dimension_semantics=("parallel",), vmem_limit_bytes=VMEM_LIMIT),
    )(xp, gamma.reshape(1, D).astype(jnp.float32),
      beta.reshape(1, D).astype(jnp.float32))
    return out[:M]


# --------------------------- flash attention kernel --------------------------
# grid = (batch, Tq-block, Tk-block); online softmax across the Tk axis with
# per-head m/l and a (tq, D) f32 accumulator in VMEM scratch.  q stays in
# (tq, D) layout, kv in (tk, 2D); heads are static column slices inside the
# kernel.  The pad/causal mask is built in-kernel from scalar-prefetched key
# lengths (SMEM) + broadcasted_iota.

def _flash_attn_kernel(lens_ref, q_ref, kv_ref, o_ref, m_sc, l_sc, acc_sc, *,
                       num_heads, head_dim, scale, causal, tq, tk):
    b = pl.program_id(0)
    qi = pl.program_id(1)
    ki = pl.program_id(2)
    nk = pl.num_programs(2)
    kv_len = lens_ref[b]

    @pl.when(ki == 0)
    def _():
        m_sc[...] = jnp.full_like(m_sc, NEG_INF)
        l_sc[...] = jnp.zeros_like(l_sc)
        acc_sc[...] = jnp.zeros_like(acc_sc)

    q = q_ref[...]                                   # (tq, D)      bf16
    kv = kv_ref[...]                                 # (tk, 2D)     bf16
    D = q.shape[-1]
    Dh = head_dim

    col = ki * tk + jax.lax.broadcasted_iota(jnp.int32, (tq, tk), 1)
    valid = col < kv_len
    if causal:
        row = qi * tq + jax.lax.broadcasted_iota(jnp.int32, (tq, tk), 0)
        valid = jnp.logical_and(valid, row >= col)

    for h in range(num_heads):
        lo, hi = h * Dh, (h + 1) * Dh
        qh = q[:, lo:hi]                             # (tq, Dh)
        kh = kv[:, lo:hi]                            # (tk, Dh)
        vh = kv[:, D + lo:D + hi]                    # (tk, Dh)

        s = jax.lax.dot_general(qh, kh, (((1,), (1,)), ((), ())),
                                preferred_element_type=jnp.float32) * scale
        s = jnp.where(valid, s, NEG_INF)

        m_prev = m_sc[:, h:h + 1]                    # (tq, 1)
        m_new = jnp.maximum(m_prev, jnp.max(s, axis=-1, keepdims=True))
        alpha = jnp.exp(m_prev - m_new)
        p = jnp.exp(s - m_new)
        p = jnp.where(valid, p, 0.0)

        l_sc[:, h:h + 1] = alpha * l_sc[:, h:h + 1] + jnp.sum(
            p, axis=-1, keepdims=True)
        pv = jnp.dot(p.astype(jnp.bfloat16), vh,
                     preferred_element_type=jnp.float32)
        acc_sc[:, lo:hi] = alpha * acc_sc[:, lo:hi] + pv
        m_sc[:, h:h + 1] = m_new

    @pl.when(ki == nk - 1)
    def _():
        l = l_sc[...]
        l = jnp.where(l <= 0.0, 1.0, l)              # fully-masked rows -> 0
        inv = pl.reciprocal(l, approx=True)          # (tq, H), EUP slot
        for h in range(num_heads):
            lo, hi = h * Dh, (h + 1) * Dh
            o_ref[:, lo:hi] = (acc_sc[:, lo:hi] * inv[:, h:h + 1]
                               ).astype(o_ref.dtype)


def pallas_attention(q, kv, key_lens, num_heads, causal,
                     tq_max=128, tk_max=128):
    """q:(B,Tq,D) bf16, kv:(B,Tk,2D) bf16 (packed K|V), key_lens:(B,) int.
    Returns (B,Tq,D) bf16."""
    B, Tq, D = q.shape
    Tk = kv.shape[1]
    Dh = D // num_heads

    tq = min(tq_max, _round_up(Tq, ROW))
    Tqp = _round_up(Tq, tq)
    tk = min(tk_max, _round_up(Tk, ROW))
    Tkp = _round_up(Tk, tk)

    qp = _pad_seq(q, Tqp)
    kvp = _pad_seq(kv, Tkp)

    kernel = functools.partial(
        _flash_attn_kernel, num_heads=num_heads, head_dim=Dh,
        scale=1.0 / math.sqrt(Dh), causal=causal, tq=tq, tk=tk)

    grid_spec = pltpu.PrefetchScalarGridSpec(
        num_scalar_prefetch=1,
        grid=(B, Tqp // tq, Tkp // tk),
        in_specs=[
            pl.BlockSpec((None, tq, D), lambda b, qi, ki, lens: (b, qi, 0)),
            pl.BlockSpec((None, tk, 2 * D), lambda b, qi, ki, lens: (b, ki, 0)),
        ],
        out_specs=pl.BlockSpec((None, tq, D), lambda b, qi, ki, lens: (b, qi, 0)),
        scratch_shapes=[
            pltpu.VMEM((tq, num_heads), jnp.float32),   # running max m
            pltpu.VMEM((tq, num_heads), jnp.float32),   # running denom l
            pltpu.VMEM((tq, D), jnp.float32),           # output accumulator
        ],
    )
    out = pl.pallas_call(
        kernel,
        out_shape=jax.ShapeDtypeStruct((B, Tqp, D), jnp.bfloat16),
        grid_spec=grid_spec,
        compiler_params=pltpu.CompilerParams(
            dimension_semantics=("parallel", "parallel", "arbitrary"),
            vmem_limit_bytes=VMEM_LIMIT),
    )(key_lens.astype(jnp.int32), qp, kvp)
    return out[:, :Tq, :]


# --------------------------- model building blocks --------------------------

def mha_self(p, x, key_lens, num_heads, causal):
    """x_new = x + Wo @ attn(LN(x) fused-QKV), all projections in Pallas."""
    B, T, D = x.shape
    x2d = x.reshape(B * T, D)
    qkv = pallas_linear(x2d, p["wqkv"], p["bqkv"], ln=(p["ln_g"], p["ln_b"]))
    q = qkv[:, :D].reshape(B, T, D)
    kv = qkv[:, D:].reshape(B, T, 2 * D)
    o = pallas_attention(q, kv, key_lens, num_heads, causal)
    out = pallas_linear(o.reshape(B * T, D), p["wo"], p["bo"], residual=x2d)
    return out.reshape(B, T, D)


def mha_cross(p, x, enc, enc_lens, num_heads):
    B, T, D = x.shape
    S = enc.shape[1]
    x2d = x.reshape(B * T, D)
    q = pallas_linear(x2d, p["wq"], p["bq"],
                      ln=(p["ln_g"], p["ln_b"])).reshape(B, T, D)
    kv = pallas_linear(enc.reshape(B * S, D), p["wkv"], p["bkv"]
                       ).reshape(B, S, 2 * D)
    o = pallas_attention(q, kv, enc_lens, num_heads, causal=False)
    out = pallas_linear(o.reshape(B * T, D), p["wo"], p["bo"], residual=x2d)
    return out.reshape(B, T, D)


def ffn_apply(p, x):
    B, T, D = x.shape
    x2d = x.reshape(B * T, D)
    h = pallas_linear(x2d, p["w1"], p["b1"], ln=(p["ln_g"], p["ln_b"]),
                      activation="relu")
    out = pallas_linear(h, p["w2"], p["b2"], residual=x2d)
    return out.reshape(B, T, D)


def encoder_layer(p, x, key_lens, num_heads):
    x = mha_self(p["attn"], x, key_lens, num_heads, causal=False)
    x = ffn_apply(p["ffn"], x)
    return x


def decoder_layer(p, x, enc, tgt_lens, enc_lens, num_heads):
    x = mha_self(p["self_attn"], x, tgt_lens, num_heads, causal=True)
    x = mha_cross(p["cross_attn"], x, enc, enc_lens, num_heads)
    x = ffn_apply(p["ffn"], x)
    return x


# --------------------------- deterministic param init -----------------------

def _w(key, din, dout):
    return (0.02 * jax.random.normal(key, (din, dout), jnp.float32)
            ).astype(jnp.bfloat16)


def _init_proj(key, din, dout):
    return {"w": _w(key, din, dout), "b": jnp.zeros((dout,), jnp.float32)}


def _init_ln(d):
    return {"g": jnp.ones((d,), jnp.float32), "b": jnp.zeros((d,), jnp.float32)}


def _init_mha_self(key, d):
    k1, k2 = jax.random.split(key)
    return {"ln_g": jnp.ones((d,), jnp.float32),
            "ln_b": jnp.zeros((d,), jnp.float32),
            "wqkv": _w(k1, d, 3 * d), "bqkv": jnp.zeros((3 * d,), jnp.float32),
            "wo": _w(k2, d, d), "bo": jnp.zeros((d,), jnp.float32)}


def _init_mha_cross(key, d):
    k1, k2, k3 = jax.random.split(key, 3)
    return {"ln_g": jnp.ones((d,), jnp.float32),
            "ln_b": jnp.zeros((d,), jnp.float32),
            "wq": _w(k1, d, d), "bq": jnp.zeros((d,), jnp.float32),
            "wkv": _w(k2, d, 2 * d), "bkv": jnp.zeros((2 * d,), jnp.float32),
            "wo": _w(k3, d, d), "bo": jnp.zeros((d,), jnp.float32)}


def _init_ffn(key, d, dff):
    k1, k2 = jax.random.split(key)
    return {"ln_g": jnp.ones((d,), jnp.float32),
            "ln_b": jnp.zeros((d,), jnp.float32),
            "w1": _w(k1, d, dff), "b1": jnp.zeros((dff,), jnp.float32),
            "w2": _w(k2, dff, d), "b2": jnp.zeros((d,), jnp.float32)}


def _init_enc_layer(key, d, dff):
    k1, k2 = jax.random.split(key)
    return {"attn": _init_mha_self(k1, d), "ffn": _init_ffn(k2, d, dff)}


def _init_dec_layer(key, d, dff):
    k1, k2, k3 = jax.random.split(key, 3)
    return {"self_attn": _init_mha_self(k1, d),
            "cross_attn": _init_mha_cross(k2, d),
            "ffn": _init_ffn(k3, d, dff)}


def init_unity_params(key, cfg):
    ks = jax.random.split(key, 9)
    d, dff = cfg["d_model"], cfg["d_ffn"]
    return {
        "speech_frontend": _init_proj(ks[0], cfg["speech_feat_dim"], d),
        "speech_encoder": [_init_enc_layer(k, d, dff)
                           for k in jax.random.split(ks[1], cfg["n_speech_enc"])],
        "speech_encoder_ln": _init_ln(d),
        "text_embed": 0.02 * jax.random.normal(ks[2], (cfg["text_vocab"], d),
                                               jnp.float32),
        "text_decoder": [_init_dec_layer(k, d, dff)
                         for k in jax.random.split(ks[3], cfg["n_text_dec"])],
        "text_decoder_ln": _init_ln(d),
        "final_proj": _init_proj(ks[4], d, cfg["text_vocab"]),
        "t2u_encoder": [_init_enc_layer(k, d, dff)
                        for k in jax.random.split(ks[5], cfg["n_t2u_enc"])],
        "t2u_encoder_ln": _init_ln(d),
        "unit_embed": 0.02 * jax.random.normal(ks[6], (cfg["unit_vocab"], d),
                                               jnp.float32),
        "t2u_decoder": [_init_dec_layer(k, d, dff)
                        for k in jax.random.split(ks[7], cfg["n_t2u_dec"])],
        "t2u_decoder_ln": _init_ln(d),
        "t2u_final_proj": _init_proj(ks[8], d, cfg["unit_vocab"]),
    }


# --------------------------- UnitYModel pieces -------------------------------

def encode_speech(p, cfg, speech_feats, speech_lens):
    B, S, F = speech_feats.shape
    d = cfg["d_model"]
    x = pallas_linear(speech_feats.reshape(B * S, F),
                      p["speech_frontend"]["w"],
                      p["speech_frontend"]["b"]).reshape(B, S, d)
    for lp in p["speech_encoder"]:
        x = encoder_layer(lp, x, speech_lens, cfg["n_heads"])
    x = pallas_layernorm(x.reshape(B * S, d), p["speech_encoder_ln"]["g"],
                         p["speech_encoder_ln"]["b"]).reshape(B, S, d)
    return x, speech_lens


def decode_text(p, cfg, prev_tokens, tgt_lens, enc_out, enc_lens):
    B, T = prev_tokens.shape
    d = cfg["d_model"]
    x = (jnp.take(p["text_embed"], prev_tokens, axis=0) * math.sqrt(d)
         ).astype(jnp.bfloat16)
    for lp in p["text_decoder"]:
        x = decoder_layer(lp, x, enc_out, tgt_lens, enc_lens, cfg["n_heads"])
    x = pallas_layernorm(x.reshape(B * T, d), p["text_decoder_ln"]["g"],
                         p["text_decoder_ln"]["b"]).reshape(B, T, d)
    return x, tgt_lens


def t2u_encode(p, cfg, text_dec_out, text_lens):
    B, T, d = text_dec_out.shape
    x = text_dec_out
    for lp in p["t2u_encoder"]:
        x = encoder_layer(lp, x, text_lens, cfg["n_heads"])
    x = pallas_layernorm(x.reshape(B * T, d), p["t2u_encoder_ln"]["g"],
                         p["t2u_encoder_ln"]["b"]).reshape(B, T, d)
    return x, text_lens


def t2u_decode(p, cfg, prev_unit_tokens, unit_lens, enc_out, enc_lens):
    B, T = prev_unit_tokens.shape
    d = cfg["d_model"]
    x = (jnp.take(p["unit_embed"], prev_unit_tokens, axis=0) * math.sqrt(d)
         ).astype(jnp.bfloat16)
    for lp in p["t2u_decoder"]:
        x = decoder_layer(lp, x, enc_out, unit_lens, enc_lens, cfg["n_heads"])
    x = pallas_layernorm(x.reshape(B * T, d), p["t2u_decoder_ln"]["g"],
                         p["t2u_decoder_ln"]["b"]).reshape(B, T, d)
    return x, unit_lens


# --------------------------- UnitYFinetuneWrapper.forward -------------------

def unity_finetune_forward(params, cfg, batch, mode="SPEECH_TO_SPEECH"):
    """Returns (text_logits, unit_logits) like UnitYFinetuneWrapper.forward."""
    freeze_s2t = mode == "TEXT_TO_SPEECH"
    freeze_t2u = mode == "SPEECH_TO_TEXT"

    def maybe_freeze(x, frozen):
        # torch.no_grad() only affects autograd; forward values are identical.
        return jax.lax.stop_gradient(x) if frozen else x

    enc_out, enc_lens = encode_speech(params, cfg, batch["speech_src"],
                                      batch["speech_lens"])
    dec_out, dec_lens = decode_text(params, cfg, batch["text_prev_tokens"],
                                    batch["text_lens"], enc_out, enc_lens)
    B, T = batch["text_prev_tokens"].shape
    text_logits = pallas_linear(dec_out.reshape(B * T, cfg["d_model"]),
                                params["final_proj"]["w"],
                                params["final_proj"]["b"],
                                out_dtype=jnp.float32
                                ).reshape(B, T, cfg["text_vocab"])
    text_logits = maybe_freeze(text_logits, freeze_s2t)
    dec_out = maybe_freeze(dec_out, freeze_s2t)

    if batch.get("unit_prev_tokens") is None:
        return text_logits, None

    u_enc_out, u_enc_lens = t2u_encode(params, cfg, dec_out, dec_lens)
    u_dec_out, _ = t2u_decode(params, cfg, batch["unit_prev_tokens"],
                              batch["unit_lens"], u_enc_out, u_enc_lens)
    Bu, Tu = batch["unit_prev_tokens"].shape
    unit_logits = pallas_linear(u_dec_out.reshape(Bu * Tu, cfg["d_model"]),
                                params["t2u_final_proj"]["w"],
                                params["t2u_final_proj"]["b"],
                                out_dtype=jnp.float32
                                ).reshape(Bu, Tu, cfg["unit_vocab"])
    unit_logits = maybe_freeze(unit_logits, freeze_t2u)
    return text_logits, unit_logits


# --------------------------- main --------------------------------------------

if __name__ == "__main__":
    cfg = dict(d_model=32, n_heads=4, d_ffn=64,
               n_speech_enc=2, n_text_dec=2, n_t2u_enc=1, n_t2u_dec=1,
               speech_feat_dim=16, text_vocab=32, unit_vocab=48)

    key = jax.random.PRNGKey(0)
    pkey, dkey = jax.random.split(key)
    params = init_unity_params(pkey, cfg)

    B, S_sp, T_txt, T_unit = 2, 16, 8, 8
    k1, k2, k3 = jax.random.split(dkey, 3)
    batch = {
        # speech src_tokens are fbank-like features: [batch, frames, feat]
        "speech_src": jax.random.normal(k1, (B, S_sp, cfg["speech_feat_dim"]),
                                        jnp.float32),
        "speech_lens": jnp.array([16, 12], jnp.int32),
        "text_prev_tokens": jax.random.randint(k2, (B, T_txt), 0,
                                               cfg["text_vocab"]),
        "text_lens": jnp.array([8, 6], jnp.int32),
        "unit_prev_tokens": jax.random.randint(k3, (B, T_unit), 0,
                                               cfg["unit_vocab"]),
        "unit_lens": jnp.array([8, 7], jnp.int32),
    }

    text_logits, unit_logits = unity_finetune_forward(params, cfg, batch,
                                                      mode="SPEECH_TO_SPEECH")
    jax.block_until_ready((text_logits, unit_logits))

    assert text_logits.shape == (B, T_txt, cfg["text_vocab"])
    assert unit_logits.shape == (B, T_unit, cfg["unit_vocab"])
    assert bool(jnp.all(jnp.isfinite(text_logits)))
    assert bool(jnp.all(jnp.isfinite(unit_logits)))
    print("KERNEL_OK")
</pallas_src>

<mosaic_0001>
module attributes {stable_mosaic.version = 11 : i64} {
  func.func @_linear_k1_kernel(%arg0: i32, %arg1: i32, %arg2: memref<16x128xf32, #tpu.memory_space<vmem>>, %arg3: memref<128x128xbf16, #tpu.memory_space<vmem>>, %arg4: memref<1x128xf32, #tpu.memory_space<vmem>>, %arg5: memref<16x128xbf16, #tpu.memory_space<vmem>>) attributes {dimension_semantics = [#tpu.dimension_semantics<parallel>, #tpu.dimension_semantics<parallel>], iteration_bounds = array<i64: 2, 1>, scalar_prefetch = 0 : i64, scratch_operands = 0 : i64, tpu.core_type = #tpu.core_type<tc>, window_params = [{transform_indices = @transform_0, window_bounds = array<i64: 16, 128>}, {transform_indices = @transform_1, window_bounds = array<i64: 128, 128>}, {transform_indices = @transform_2, window_bounds = array<i64: 1, 128>}, {transform_indices = @transform_3, window_bounds = array<i64: 16, 128>}]} {
    %c0 = arith.constant 0 : index
    %c0_0 = arith.constant 0 : index
    %0 = vector.load %arg2[%c0, %c0_0] : memref<16x128xf32, #tpu.memory_space<vmem>>, vector<16x128xf32>
    %1 = arith.truncf %0 : vector<16x128xf32> to vector<16x128xbf16>
    %c0_1 = arith.constant 0 : index
    %c0_2 = arith.constant 0 : index
    %2 = vector.load %arg3[%c0_1, %c0_2] : memref<128x128xbf16, #tpu.memory_space<vmem>>, vector<128x128xbf16>
    %cst = arith.constant dense<0.000000e+00> : vector<16x128xf32>
    %3 = tpu.matmul %1, %2, %cst {dimension_numbers = #tpu.dot_dimension_numbers<[1], [0], [0], [1], [0, 0, 1, 1], [], []>} : vector<16x128xbf16>, vector<128x128xbf16>, vector<16x128xf32> -> vector<16x128xf32>
    %c0_3 = arith.constant 0 : index
    %c0_4 = arith.constant 0 : index
    %4 = vector.load %arg4[%c0_3, %c0_4] : memref<1x128xf32, #tpu.memory_space<vmem>>, vector<1x128xf32>
    %5 = vector.broadcast %4 : vector<1x128xf32> to vector<16x128xf32>
    %6 = arith.addf %3, %5 : vector<16x128xf32>
    %7 = arith.truncf %6 : vector<16x128xf32> to vector<16x128xbf16>
    %c0_5 = arith.constant 0 : index
    %c0_6 = arith.constant 0 : index
    %8 = vector.load %arg5[%c0_5, %c0_6] : memref<16x128xbf16, #tpu.memory_space<vmem>>, vector<16x128xbf16>
    tpu.vector_store %arg5[%c0_5, %c0_6], %7 {strides = array<i32>} : memref<16x128xbf16, #tpu.memory_space<vmem>>, vector<16x128xbf16>,
    return
  }
  func.func @transform_0(%arg0: i32, %arg1: i32) -> (i32, i32) {
    %c0_i32 = arith.constant 0 : i32
    %c0_i32_0 = arith.constant 0 : i32
    return %arg0, %c0_i32 : i32, i32
  }
  func.func @transform_1(%arg0: i32, %arg1: i32) -> (i32, i32) {
    %c0_i32 = arith.constant 0 : i32
    %c0_i32_0 = arith.constant 0 : i32
    return %c0_i32, %arg1 : i32, i32
  }
  func.func @transform_2(%arg0: i32, %arg1: i32) -> (i32, i32) {
    %c0_i32 = arith.constant 0 : i32
    %c0_i32_0 = arith.constant 0 : i32
    return %c0_i32, %arg1 : i32, i32
  }
  func.func @transform_3(%arg0: i32, %arg1: i32) -> (i32, i32) {
    %c0_i32 = arith.constant 0 : i32
    return %arg0, %arg1 : i32, i32
  }
}

</mosaic_0001>

<llo_original>
// kernel: tpu_custom_call.1
$region0: #{tpu_custom_call.1}
  #allocation0 [shape = 'u32[]', space=smem, size = 0x4, offset = 0x4, fixed_abs, tag = 'smem constant byte address 0x4 - core index']
  #allocation1 [shape = 'u32[72,128]{1,0:T(1,128)}', space=vmem, size = 0x9000, scoped, tag = 'internal scratch']
  %s0 = inlined_call_operand.hbm [shape: f32[32,128], index: 0, kind: input, shape index: {}]
  %s1 = inlined_call_operand.hbm [shape: bf16[128,128], index: 1, kind: input, shape index: {}]
  %s2 = inlined_call_operand.vmem [shape: f32[1,128], index: 2, kind: input, shape index: {}]
  %s3 = inlined_call_operand.hbm [shape: bf16[32,128], index: 3, kind: output, shape index: {}]
  %s4 = sld [smem:[#allocation0]]
  $region53: #{tpu_custom_call.1} parent=0
    _
  %s6 = ssub.s32 1, %s4
  %s7 = scalar_select 0, %s6, %s4
  $region1: #{tpu_custom_call.1} parent=0
    #allocation2 [shape = 'u8[16384]{0}', space=vmem, size = 0x4000, scoped, tag = 'input window, operand 0']
    #allocation3 [shape = 's32[2]{0}', space=sflag, size = 0x8, scoped, tag = 'scoped memory for tpu_custom_call.1']
    #allocation4 [shape = 's32[2]{0}', space=sflag, size = 0x8, scoped, tag = 'scoped memory for tpu_custom_call.1']
    #allocation5 [shape = 'u8[32768]{0}', space=vmem, size = 0x8000, scoped, tag = 'input window, operand 1, single buffered']
    #allocation6 [shape = 's32[1]{0}', space=sflag, size = 0x4, scoped, tag = 'scoped memory for tpu_custom_call.1']
    #allocation7 [shape = 'u8[8192]{0}', space=vmem, size = 0x2000, scoped, tag = 'output window, operand 0']
    %8 = vsyncpa [#allocation3], 0
    %s9 = scalar_lea.sflag [#allocation3], 1
    %10 = vsyncpa %s9, 0
    %11 = vsyncpa [#allocation6], 0
    %12 = vsyncpa [#allocation4], 0
    %s13 = scalar_lea.sflag [#allocation4], 1
    %14 = vsyncpa %s13, 0
    loop: start=0, step=1, limit=4
    $region2: #{tpu_custom_call.1} parent=1 // loop_pre_header
      _
    $region3: #{tpu_custom_call.1} parent=1 // loop_header
      %s16 = sphi 0, %s20
      %p17 = scmp.ge.s32.totalorder %s16, 4
      %s23 = sphi 0, %s35
      %s24 = sphi 0, %s31
      %s25 = sphi 0, %s23
      %s26 = sphi 0, %s24
      %s27 = sphi 0, %s25
      %s28 = sphi 0, %s26
      %s38 = sphi 0, %s40
      %s41 = sphi 0, %s38
      %s42 = sphi 0, %s41
      %s58 = sphi 0, %s42
      %s64 = sphi 0, %s66
      %s67 = sphi 0, %s64
      %s68 = sphi 0, %s67
      %s84 = sphi 0, %s68
      %s90 = sphi 0, %s92
      %s93 = sphi 0, %s90
      %s94 = sphi 0, %s93
      %s110 = sphi 0, %s94
      %s118 = sphi 0, %s120
      %s121 = sphi 0, %s118
      %s122 = sphi 0, %s121
      %s138 = sphi 0, %s122
    $region4: #{tpu_custom_call.1} parent=1 // loop_header_branch
      %19 = sbr.rel (%p17) target = $region8
    $region5: #{tpu_custom_call.1} parent=1 // loop_body
      %s21 = ssub.s32 %s16, 1
      %s22 = ssub.s32 %s16, 2
      %s29 = sadd.s32 1, %s24
      %p30 = scmp.ge.s32.totalorder %s29, 1
      %s31 = scalar_select %p30, 0, %s29
      %s32 = sadd.s32 1, %s23
      %s33 = scalar_select %p30, %s32, %s23
      %p34 = scmp.ge.s32.totalorder %s33, 2
      %s35 = scalar_select %p34, 0, %s33
      %s36 = ssub.s32 %s23, %s35
      %p37 = scmp.eq.s32.totalorder %s36, 0
      %s39 = sadd.s32 %s38, 1
      %s40 = scalar_select %p37, %s38, %s39
      %p43 = pneg %p37
      %p44 = scmp.eq.s32.totalorder %s16, 1
      %p45 = por %p43, %p44
      %p46 = scmp.ne.s32.totalorder %s38, %s41
      %p47 = scmp.eq.s32.totalorder %s16, 0
      %p48 = por %p46, %p47
      %p49 = scmp.ne.s32.totalorder %s38, %s41
      %p50 = scmp.eq.s32.totalorder %s21, 1
      %p51 = por %p49, %p50
      %p52 = scmp.ne.s32.totalorder %s41, %s42
      %p53 = scmp.eq.s32.totalorder %s21, 0
      %p54 = por %p52, %p53
      %p55 = scmp.ne.s32.totalorder %s41, %s42
      %p56 = scmp.eq.s32.totalorder %s22, 1
      %p57 = por %p55, %p56
      %p59 = scmp.ne.s32.totalorder %s42, %s58
      %p60 = scmp.eq.s32.totalorder %s22, 0
      %p61 = por %p59, %p60
      %s62 = ssub.s32 %s24, %s31
      %p63 = scmp.eq.s32.totalorder %s62, 0
      %s65 = sadd.s32 %s64, 1
      %s66 = scalar_select %p63, %s64, %s65
      %p69 = pneg %p63
      %p70 = scmp.eq.s32.totalorder %s16, 1
      %p71 = por %p69, %p70
      %p72 = scmp.ne.s32.totalorder %s64, %s67
      %p73 = scmp.eq.s32.totalorder %s16, 0
      %p74 = por %p72, %p73
      %p75 = scmp.ne.s32.totalorder %s64, %s67
      %p76 = scmp.eq.s32.totalorder %s21, 1
      %p77 = por %p75, %p76
      %p78 = scmp.ne.s32.totalorder %s67, %s68
      %p79 = scmp.eq.s32.totalorder %s21, 0
      %p80 = por %p78, %p79
      %p81 = scmp.ne.s32.totalorder %s67, %s68
      %p82 = scmp.eq.s32.totalorder %s22, 1
      %p83 = por %p81, %p82
      %p85 = scmp.ne.s32.totalorder %s68, %s84
      %p86 = scmp.eq.s32.totalorder %s22, 0
      %p87 = por %p85, %p86
      %s88 = ssub.s32 %s24, %s31
      %p89 = scmp.eq.s32.totalorder %s88, 0
      %s91 = sadd.s32 %s90, 1
      %s92 = scalar_select %p89, %s90, %s91
      %p95 = pneg %p89
      %p96 = scmp.eq.s32.totalorder %s16, 1
      %p97 = por %p95, %p96
      %p98 = scmp.ne.s32.totalorder %s90, %s93
      %p99 = scmp.eq.s32.totalorder %s16, 0
      %p100 = por %p98, %p99
      %p101 = scmp.ne.s32.totalorder %s90, %s93
      %p102 = scmp.eq.s32.totalorder %s21, 1
      %p103 = por %p101, %p102
      %p104 = scmp.ne.s32.totalorder %s93, %s94
      %p105 = scmp.eq.s32.totalorder %s21, 0
      %p106 = por %p104, %p105
      %p107 = scmp.ne.s32.totalorder %s93, %s94
      %p108 = scmp.eq.s32.totalorder %s22, 1
      %p109 = por %p107, %p108
      %p111 = scmp.ne.s32.totalorder %s94, %s110
      %p112 = scmp.eq.s32.totalorder %s22, 0
      %p113 = por %p111, %p112
      %s114 = ssub.s32 %s23, %s35
      %s115 = ssub.s32 %s24, %s31
      %s116 = sor.u32 %s114, %s115
      %p117 = scmp.eq.s32.totalorder %s116, 0
      %s119 = sadd.s32 %s118, 1
      %s120 = scalar_select %p117, %s118, %s119
      %p123 = pneg %p117
      %p124 = scmp.eq.s32.totalorder %s16, 1
      %p125 = por %p123, %p124
      %p126 = scmp.ne.s32.totalorder %s118, %s121
      %p127 = scmp.eq.s32.totalorder %s16, 0
      %p128 = por %p126, %p127
      %p129 = scmp.ne.s32.totalorder %s118, %s121
      %p130 = scmp.eq.s32.totalorder %s21, 1
      %p131 = por %p129, %p130
      %p132 = scmp.ne.s32.totalorder %s121, %s122
      %p133 = scmp.eq.s32.totalorder %s21, 0
      %p134 = por %p132, %p133
      %p135 = scmp.ne.s32.totalorder %s121, %s122
      %p136 = scmp.eq.s32.totalorder %s22, 1
      %p137 = por %p135, %p136
      %p139 = scmp.ne.s32.totalorder %s122, %s138
      %p140 = scmp.eq.s32.totalorder %s22, 0
      %p141 = por %p139, %p140
      %p142 = scmp.le.s32.totalorder 1, %s16
      %p143 = scmp.lt.s32.totalorder %s16, 3
      %p144 = pnand %p142, %p143
      %p145 = pneg %p144
      // Predicated region
      $region9: #{tpu_custom_call.1} parent=5 // pred_check
        _
      $region10: #{tpu_custom_call.1} parent=5 // pred_check_branch
        %147 = sbr.rel (%p144) target = $region12
      $region11: #{tpu_custom_call.1} parent=5 // pred_region
        %s148 = ssub.s32 %s16, 1
        // Predicated region
        $region13: #{tpu_custom_call.1} parent=11 // pred_check
          %p149 = pneg %p80
        $region14: #{tpu_custom_call.1} parent=11 // pred_check_branch
          %151 = sbr.rel (%p149) target = $region16
        $region15: #{tpu_custom_call.1} parent=11 // pred_region
          %153 = vsyncadd [#allocation6], 0
          %s154 = smul.addr %s26, 4
          %s155 = scalar_lea.hbm %s1, %s154
          %s156 = sshll.u32 %s155, 4
          %s157 = int_to_ptr.hbm [resolvable:$true] %s156
          %s158 = sshll.u32 [#allocation5], 4
          %s159 = int_to_ptr.vmem [resolvable:$true] %s158
          %164 = dma.hbm_to_vmem [thread:$0]  %s157, 1024, %s159, [#allocation6], 64, 64, 4
        $region16: #{tpu_custom_call.1} parent=11 // pred_fallthru
          _
        // Predicated region
        $region17: #{tpu_custom_call.1} parent=11 // pred_check
          %p165 = pneg %p106
        $region18: #{tpu_custom_call.1} parent=11 // pred_check_branch
          %167 = sbr.rel (%p165) target = $region20
        $region19: #{tpu_custom_call.1} parent=11 // pred_region
          %p168 = scmp.lt.s32.totalorder %s26, 0
          %s169 = scalar_select %p168, %s26, 0
          %s170 = scalar_lea.vmem %s2, %s169
        $region20: #{tpu_custom_call.1} parent=11 // pred_fallthru
          _
      $region12: #{tpu_custom_call.1} parent=5 // pred_fallthru
        _
      %p171 = scmp.lt.s32.totalorder %s16, 2
      // Predicated region
      $region21: #{tpu_custom_call.1} parent=5 // pred_check
        %p172 = pneg %p171
      $region22: #{tpu_custom_call.1} parent=5 // pred_check_branch
        %174 = sbr.rel (%p172) target = $region24
      $region23: #{tpu_custom_call.1} parent=5 // pred_region
        // Predicated region
        $region25: #{tpu_custom_call.1} parent=23 // pred_check
          %p175 = pneg %p48
        $region26: #{tpu_custom_call.1} parent=23 // pred_check_branch
          %177 = sbr.rel (%p175) target = $region28
        $region27: #{tpu_custom_call.1} parent=23 // pred_region
          %s178 = sand.u32 %s38, 1
          %s179 = scalar_lea.sflag [#allocation3], %s178
          %s180 = sand.u32 %s38, 1
          %s181 = smul.addr %s180, 16
          %s182 = scalar_lea.vmem [#allocation2], %s181
          %s183 = smul.u32 2, %s23
          %185 = vsyncadd %s179, 0
          %s186 = smul.addr %s183, 8
          %s187 = scalar_lea.hbm %s0, %s186
          %s188 = sshll.u32 %s187, 4
          %s189 = int_to_ptr.hbm [resolvable:$true] %s188
          %s190 = sshll.u32 %s182, 4
          %s191 = int_to_ptr.vmem [resolvable:$true] %s190
          %196 = dma.hbm_to_vmem [thread:$0]  %s189, 256, %s191, %s179, 128, 128, 8
        $region28: #{tpu_custom_call.1} parent=23 // pred_fallthru
          _
      $region24: #{tpu_custom_call.1} parent=5 // pred_fallthru
        _
      %p197 = scmp.le.s32.totalorder 1, %s16
      %p198 = scmp.lt.s32.totalorder %s16, 3
      %p199 = pnand %p197, %p198
      %p200 = pneg %p199
      // Predicated region
      $region29: #{tpu_custom_call.1} parent=5 // pred_check
        _
      $region30: #{tpu_custom_call.1} parent=5 // pred_check_branch
        %202 = sbr.rel (%p199) target = $region32
      $region31: #{tpu_custom_call.1} parent=5 // pred_region
        %s203 = ssub.s32 %s16, 1
        %s204 = sand.u32 %s41, 1
        %s205 = scalar_lea.sflag [#allocation3], %s204
        %s206 = sand.u32 %s41, 1
        %s207 = smul.addr %s206, 16
        %s208 = scalar_lea.vmem [#allocation2], %s207
        // Predicated region
        $region33: #{tpu_custom_call.1} parent=31 // pred_check
          %p209 = pneg %p54
        $region34: #{tpu_custom_call.1} parent=31 // pred_check_branch
          %211 = sbr.rel (%p209) target = $region36
        $region35: #{tpu_custom_call.1} parent=31 // pred_region
          %213 = dma.done %s205, 256
        $region36: #{tpu_custom_call.1} parent=31 // pred_fallthru
          _
        // Predicated region
        $region37: #{tpu_custom_call.1} parent=31 // pred_check
          %p214 = pneg %p80
        $region38: #{tpu_custom_call.1} parent=31 // pred_check_branch
          %216 = sbr.rel (%p214) target = $region40
        $region39: #{tpu_custom_call.1} parent=31 // pred_region
          %218 = dma.done [#allocation6], 1024
        $region40: #{tpu_custom_call.1} parent=31 // pred_fallthru
          _
        %s219 = sand.u32 %s41, 1
        %s220 = scalar_lea.sflag [#allocation3], %s219
        %s221 = sand.u32 %s41, 1
        %s222 = smul.addr %s221, 16
        %s223 = scalar_lea.vmem [#allocation2], %s222
        %p224 = pneg %p54
        %p225 = pneg %p51
        %p226 = pneg %p80
        %p227 = pneg %p77
        %p228 = scmp.lt.s32.totalorder %s26, 0
        %s229 = scalar_select %p228, %s26, 0
        %s230 = scalar_lea.vmem %s2, %s229
        %p231 = pneg %p106
        %p232 = pneg %p103
        %p233 = pneg %p134
        %p234 = pneg %p131
        %s235 = sand.u32 %s121, 1
        %s236 = scalar_lea.sflag [#allocation4], %s235
        %s237 = sand.u32 %s121, 1
        %s238 = smul.addr %s237, 8
        %s239 = scalar_lea.vmem [#allocation7], %s238
        %s240 = smul.u32 2, %s25
        %p241 = scmp.lt.s32.totalorder %s26, 0
        %s242 = scalar_select %p241, %s26, 0
        %s243 = scalar_lea.vmem %s2, %s242
        %s244 = smul.u32 2, %s25
        %v245 = vld [vmem:[%s208] sm:$0xff]
        %v246 = vld [vmem:[%s208 + $0x8] sm:$0xff]
        %v247 = vpack.c.bf16 %v246, %v245
        %v248 = vld [vmem:[#allocation5] sm:$0xf]
        %v249 = vld [vmem:[#allocation5 + $0x4] sm:$0xf]
        %v250 = vld [vmem:[#allocation5 + $0x8] sm:$0xf]
        %v251 = vld [vmem:[#allocation5 + $0xc] sm:$0xf]
        %v252 = vld [vmem:[#allocation5 + $0x10] sm:$0xf]
        %v253 = vld [vmem:[#allocation5 + $0x14] sm:$0xf]
        %v254 = vld [vmem:[#allocation5 + $0x18] sm:$0xf]
        %v255 = vld [vmem:[#allocation5 + $0x1c] sm:$0xf]
        %v256 = vld [vmem:[#allocation5 + $0x20] sm:$0xf]
        %v257 = vld [vmem:[#allocation5 + $0x24] sm:$0xf]
        %v258 = vld [vmem:[#allocation5 + $0x28] sm:$0xf]
        %v259 = vld [vmem:[#allocation5 + $0x2c] sm:$0xf]
        %v260 = vld [vmem:[#allocation5 + $0x30] sm:$0xf]
        %v261 = vld [vmem:[#allocation5 + $0x34] sm:$0xf]
        %v262 = vld [vmem:[#allocation5 + $0x38] sm:$0xf]
        %v263 = vld [vmem:[#allocation5 + $0x3c] sm:$0xf]
        %v264 = vld [vmem:[%s243] sm:$0x1]
        %v266 = vperm.slane %v264, 0
        %v284 = vunpack.c.l.b16 %v248
        %v285 = vunpack.c.l.b16 %v249
        %v286 = vunpack.c.l.b16 %v250
        %v287 = vunpack.c.l.b16 %v251
        %v288 = vunpack.c.l.b16 %v252
        %v289 = vunpack.c.l.b16 %v253
        %v290 = vunpack.c.l.b16 %v254
        %v291 = vunpack.c.l.b16 %v255
        %v292 = vunpack.c.l.b16 %v256
        %v293 = vunpack.c.l.b16 %v257
        %v294 = vunpack.c.l.b16 %v258
        %v295 = vunpack.c.l.b16 %v259
        %v296 = vunpack.c.l.b16 %v260
        %v297 = vunpack.c.l.b16 %v261
        %v298 = vunpack.c.l.b16 %v262
        %v299 = vunpack.c.l.b16 %v263
        %v300 = vpack.c.b16 %v285, %v284
        %v301 = vpack.c.b16 %v287, %v286
        %v302 = vpack.c.b16 %v289, %v288
        %v303 = vpack.c.b16 %v291, %v290
        %v304 = vpack.c.b16 %v293, %v292
        %v305 = vpack.c.b16 %v295, %v294
        %v306 = vpack.c.b16 %v297, %v296
        %v307 = vpack.c.b16 %v299, %v298
        %316 = vmatpush.bf16.msra.mxu0 %v307
        %317 = vmatpush.bf16.msra.mxu0 %v306
        %318 = vmatpush.bf16.msra.mxu0 %v305
        %319 = vmatpush.bf16.msra.mxu0 %v304
        %320 = vmatpush.bf16.msra.mxu0 %v303
        %321 = vmatpush.bf16.msra.mxu0 %v302
        %322 = vmatpush.bf16.msra.mxu0 %v301
        %323 = vmatpush.bf16.msra.mxu0 %v300
        %324 = vmatmul.bf16.gmra.mxu0 %v247
        %v325 = vpop.f32.mrf.mxu0
        %v326 = vadd.f32 %v266, %v325
        %v327 = vpop.f32.mrf.mxu0
        %v328 = vadd.f32 %v266, %v327
        %329 = vdwg.mxu0
        %v330 = vpack.c.bf16 %v326, %v326
        %v331 = vpack.c.bf16 %v328, %v328
        %332 = vst [vmem:[%s239] sm:$0xf] %v330
        %333 = vst [vmem:[%s239 + $0x4] sm:$0xf] %v331
        %s334 = sand.u32 %s121, 1
        %s335 = scalar_lea.sflag [#allocation4], %s334
        %s336 = sand.u32 %s121, 1
        %s337 = smul.addr %s336, 8
        %s338 = scalar_lea.vmem [#allocation7], %s337
        // Predicated region
        $region41: #{tpu_custom_call.1} parent=31 // pred_check
          %p339 = pneg %p131
        $region42: #{tpu_custom_call.1} parent=31 // pred_check_branch
          %341 = sbr.rel (%p339) target = $region44
        $region43: #{tpu_custom_call.1} parent=31 // pred_region
          %s342 = smul.u32 2, %s25
          %344 = vsyncadd %s335, 0
          %s345 = sadd.s32 %s26, %s342
          %s346 = smul.addr %s345, 4
          %s347 = scalar_lea.hbm %s3, %s346
          %s348 = sshll.u32 %s338, 4
          %s349 = int_to_ptr.vmem [resolvable:$true] %s348
          %s350 = sshll.u32 %s347, 4
          %s351 = int_to_ptr.hbm [resolvable:$true] %s350
          %356 = dma.vmem_to_hbm [thread:$0]  %s349, 128, %s351, %s335, 64, 64, 4
        $region44: #{tpu_custom_call.1} parent=31 // pred_fallthru
          _
      $region32: #{tpu_custom_call.1} parent=5 // pred_fallthru
        _
      %p357 = scmp.le.s32.totalorder 2, %s16
      // Predicated region
      $region45: #{tpu_custom_call.1} parent=5 // pred_check
        %p358 = pneg %p357
      $region46: #{tpu_custom_call.1} parent=5 // pred_check_branch
        %360 = sbr.rel (%p358) target = $region48
      $region47: #{tpu_custom_call.1} parent=5 // pred_region
        %s361 = ssub.s32 %s16, 2
        // Predicated region
        $region49: #{tpu_custom_call.1} parent=47 // pred_check
          %p362 = pneg %p137
        $region50: #{tpu_custom_call.1} parent=47 // pred_check_branch
          %364 = sbr.rel (%p362) target = $region52
        $region51: #{tpu_custom_call.1} parent=47 // pred_region
          %s365 = sand.u32 %s122, 1
          %s366 = scalar_lea.sflag [#allocation4], %s365
          %s367 = sand.u32 %s122, 1
          %s368 = smul.addr %s367, 8
          %s369 = scalar_lea.vmem [#allocation7], %s368
          %371 = dma.done %s366, 128
        $region52: #{tpu_custom_call.1} parent=47 // pred_fallthru
          _
      $region48: #{tpu_custom_call.1} parent=5 // pred_fallthru
        _
    $region6: #{tpu_custom_call.1} parent=1 // loop_footer
      %s20 = sadd.s32 1, %s16
    $region7: #{tpu_custom_call.1} parent=1 // loop_footer_branch
      %15 = sbr.rel target = $region3
    $region8: #{tpu_custom_call.1} parent=1 // loop_exit
      _
    %372 = vsyncpa [#allocation3], 1
    %s373 = scalar_lea.sflag [#allocation3], 1
    %374 = vsyncpa %s373, 1
    %375 = vsyncpa [#allocation6], 1
    %376 = vsyncpa [#allocation4], 1
    %s377 = scalar_lea.sflag [#allocation4], 1
    %378 = vsyncpa %s377, 1

</llo_original>
